<compile_context>
chip_gen: v7x
topology: tpu7x:2x2x1
jax: 0.10.0
libtpu: 0.0.40
codegen_flags: <defaults>
</compile_context>

<pallas_src>
import math

import jax
import jax.numpy as jnp
from jax.experimental import pallas as pl
from jax.experimental.pallas import tpu as pltpu


def _matrix_scale_kernel(x_ref, w_ref, o_ref):
    # x_ref: (TB, S)       -- contiguous 2-D block, no 8x sublane padding
    # w_ref: (S, TD)       -- already in the output's (sublane=S, lane=D) layout
    # o_ref: (TB, S, TD)
    x = x_ref[...]                                # (TB, S)
    w = w_ref[...]                                # (S, TD)
    # Broadcast multiply on the VPU; the tiny x relayout is negligible next to
    # the TB*S*TD output store that dominates HBM traffic.
    o_ref[...] = x[:, :, None] * w[None, :, :]


def _round_up(x: int, m: int) -> int:
    return ((x + m - 1) // m) * m


def _default_vmem_budget() -> tuple[int, int]:
    """(tile budget, vmem_limit_bytes) derived from the chip's VMEM capacity."""
    try:
        cap = int(pltpu.get_tpu_info().vmem_capacity_bytes)
    except Exception:
        cap = 64 << 20                            # conservative (v7x per-TC)
    limit = min(int(cap * 0.75), 96 << 20)        # v5e/v6e ~96 MiB, v7x ~48 MiB
    limit = max(limit, 32 << 20)
    budget = int(limit * 0.85)
    return budget, limit


def _pick_tiles(b, s, d, itemsize, *, target_tile_bytes, vmem_budget_bytes):
    """Choose (batch_tile, d_tile). Prefers td == d (contiguous writeback),
    then grows tb; accounts for (8,128) padding of every block."""
    s_sub = _round_up(s, 8)        # sublane-padded S (weight / output blocks)
    s_lane = _round_up(s, 128)     # lane-padded S (x block's last dim)
    d_lane = _round_up(d, 128)

    def fits(td_pad, tb):
        w_b = 2 * s_sub * td_pad * itemsize                    # double-buffered
        o_b = 2 * tb * s_sub * td_pad * itemsize
        x_b = 2 * _round_up(tb, 8) * s_lane * itemsize
        return w_b + o_b + x_b <= vmem_budget_bytes

    tb_min = min(b, 8)
    if fits(d_lane, tb_min):
        # Full d_model per block: each batch row's write is one contiguous run.
        td, td_pad = d, d_lane
    else:
        # Largest multiple of 128 that still allows an 8-row batch tile.
        x_min = 2 * 8 * s_lane * itemsize
        denom = 2 * s_sub * itemsize * (1 + tb_min)
        td = max(128, ((vmem_budget_bytes - x_min) // denom) // 128 * 128)
        td = min(td, (d_lane // 128) * 128)
        if td >= d:
            td = d
        td_pad = _round_up(td, 128)

    out_row = s_sub * td_pad * itemsize          # output bytes per batch row
    x_row = s_lane * itemsize                    # x bytes per batch row
    w_b = 2 * s_sub * td_pad * itemsize
    tb_budget = max(1, (vmem_budget_bytes - w_b) // (2 * (out_row + x_row)))
    tb_target = max(1, target_tile_bytes // out_row)
    tb = max(1, min(b, tb_budget, tb_target))
    if tb < b:
        # x block is 2-D (tb, S): its sublane dim must be a multiple of 8
        # (or equal the full batch). cdiv grid masks the partial edge block.
        tb = min(b, max(8, (tb // 8) * 8))
    return tb, td


def matrix_scale_embedding(
    x: jax.Array,
    layers: jax.Array,
    *,
    block_batch: int | None = None,
    block_d: int | None = None,
    target_tile_bytes: int = 8 * 1024 * 1024,
    vmem_budget_bytes: int | None = None,
    vmem_limit_bytes: int | None = None,
) -> jax.Array:
    """x: (B, S, 1), layers: (S, D) -> (B, S, D) with out = x * layers."""
    b, s, one = x.shape
    assert one == 1, "x must have trailing singleton dim"
    s_w, d = layers.shape
    assert s_w == s, "seq_len must equal n_substructures for the broadcast"
    assert x.dtype == layers.dtype

    budget_default, limit_default = _default_vmem_budget()
    if vmem_budget_bytes is None:
        vmem_budget_bytes = budget_default
    if vmem_limit_bytes is None:
        vmem_limit_bytes = limit_default

    itemsize = jnp.dtype(x.dtype).itemsize
    tb, td = _pick_tiles(
        b, s, d, itemsize,
        target_tile_bytes=target_tile_bytes,
        vmem_budget_bytes=vmem_budget_bytes,
    )
    if block_batch is not None:
        tb = block_batch
    if block_d is not None:
        td = block_d
    # (8,128) layout constraints on the chosen blocks.
    assert tb == b or tb % 8 == 0, "batch tile must be a multiple of 8 or == B"
    assert td == d or td % 128 == 0, "d tile must be a multiple of 128 or == D"

    # (B, S, 1) -> (B, S): metadata-only reshape; the x block is a dense
    # (tb, S) slab instead of a sublane-padded (tb, 1, S) one.
    x2 = x.reshape(b, s)

    n_d = pl.cdiv(d, td)
    n_b = pl.cdiv(b, tb)
    # d outer, batch INNER: the weight block index is constant across the inner
    # loop, so the weight tile is fetched once per d block and stays resident.
    grid = (n_d, n_b)

    cost = pl.CostEstimate(
        flops=b * s * d,
        transcendentals=0,
        # output written once, weight read once per d block (s*d total),
        # x read once per d block.
        bytes_accessed=itemsize * (b * s * d + s * d + n_d * b * s),
    )

    return pl.pallas_call(
        _matrix_scale_kernel,
        out_shape=jax.ShapeDtypeStruct((b, s, d), x.dtype),
        grid_spec=pltpu.PrefetchScalarGridSpec(
            num_scalar_prefetch=0,
            grid=grid,
            in_specs=[
                pl.BlockSpec((tb, s), lambda dj, bi: (bi, 0)),
                pl.BlockSpec((s, td), lambda dj, bi: (0, dj)),
            ],
            out_specs=pl.BlockSpec((tb, s, td), lambda dj, bi: (bi, 0, dj)),
        ),
        compiler_params=pltpu.CompilerParams(
            dimension_semantics=("parallel", "parallel"),
            vmem_limit_bytes=int(vmem_limit_bytes),
        ),
        cost_estimate=cost,
    )(x2, layers)


def xavier_uniform(key, shape, dtype=jnp.float32):
    # nn.init.xavier_uniform_ for a 2-D tensor (fan_out, fan_in) = shape
    fan_out, fan_in = shape
    bound = math.sqrt(6.0 / (fan_in + fan_out))
    return jax.random.uniform(key, shape, dtype=dtype, minval=-bound, maxval=bound)


if __name__ == "__main__":
    key = jax.random.PRNGKey(0)
    k1, k2, k3, k4, k5, k6 = jax.random.split(key, 6)

    # 1) Small, module-consistent shapes (seq_len == n_substructures),
    #    auto-picked tiles (single grid step, td == d).
    b, s, d = 2, 8, 32
    x = jax.random.normal(k1, (b, s, 1), dtype=jnp.float32)
    w = xavier_uniform(k2, (s, d))
    out = jax.block_until_ready(matrix_scale_embedding(x, w))
    ref = x * w[None, :, :]
    assert out.shape == (b, s, d)
    assert jnp.allclose(out, ref, atol=1e-6, rtol=1e-6)

    # 2) Multi-step grid over both axes: d outer, batch inner, so the weight
    #    block stays resident across the inner batch loop.
    b2, s2, d2 = 16, 64, 256
    x2 = jax.random.normal(k3, (b2, s2, 1), dtype=jnp.float32)
    w2 = xavier_uniform(k4, (s2, d2))
    out2 = jax.block_until_ready(
        matrix_scale_embedding(x2, w2, block_batch=8, block_d=128))
    assert out2.shape == (b2, s2, d2)
    assert jnp.allclose(out2, x2 * w2[None, :, :], atol=1e-6, rtol=1e-6)

    # 3) Batch not divisible by the batch tile: cdiv grid + masked edge block.
    b3, s3, d3 = 10, 8, 256
    x3 = jax.random.normal(k5, (b3, s3, 1), dtype=jnp.float32)
    w3 = xavier_uniform(k6, (s3, d3))
    out3 = jax.block_until_ready(
        matrix_scale_embedding(x3, w3, block_batch=8))
    assert out3.shape == (b3, s3, d3)
    assert jnp.allclose(out3, x3 * w3[None, :, :], atol=1e-6, rtol=1e-6)

    print("KERNEL_OK")
</pallas_src>

<mosaic_0001>
module attributes {stable_mosaic.version = 11 : i64} {
  func.func @_matrix_scale_kernel(%arg0: i32, %arg1: i32, %arg2: memref<2x8xf32, #tpu.memory_space<vmem>>, %arg3: memref<8x32xf32, #tpu.memory_space<vmem>>, %arg4: memref<2x8x32xf32, #tpu.memory_space<vmem>>) attributes {dimension_semantics = [#tpu.dimension_semantics<parallel>, #tpu.dimension_semantics<parallel>], iteration_bounds = array<i64: 1, 1>, scalar_prefetch = 0 : i64, scratch_operands = 0 : i64, tpu.core_type = #tpu.core_type<tc>, window_params = [{transform_indices = @transform_0, window_bounds = array<i64: 2, 8>}, {transform_indices = @transform_1, window_bounds = array<i64: 8, 32>}, {transform_indices = @transform_2, window_bounds = array<i64: 2, 8, 32>}]} {
    %c0 = arith.constant 0 : index
    %c0_0 = arith.constant 0 : index
    %0 = vector.load %arg2[%c0, %c0_0] : memref<2x8xf32, #tpu.memory_space<vmem>>, vector<2x8xf32>
    %c0_1 = arith.constant 0 : index
    %c0_2 = arith.constant 0 : index
    %1 = vector.load %arg3[%c0_1, %c0_2] : memref<8x32xf32, #tpu.memory_space<vmem>>, vector<8x32xf32>
    %2 = vector.shape_cast %0 : vector<2x8xf32> to vector<2x8x1xf32>
    %3 = vector.shape_cast %1 : vector<8x32xf32> to vector<1x8x32xf32>
    %4 = vector.broadcast %2 : vector<2x8x1xf32> to vector<2x8x32xf32>
    %5 = vector.broadcast %3 : vector<1x8x32xf32> to vector<2x8x32xf32>
    %6 = arith.mulf %4, %5 : vector<2x8x32xf32>
    %c0_3 = arith.constant 0 : index
    %c0_4 = arith.constant 0 : index
    %c0_5 = arith.constant 0 : index
    %7 = vector.load %arg4[%c0_3, %c0_4, %c0_5] : memref<2x8x32xf32, #tpu.memory_space<vmem>>, vector<2x8x32xf32>
    tpu.vector_store %arg4[%c0_3, %c0_4, %c0_5], %6 {strides = array<i32>} : memref<2x8x32xf32, #tpu.memory_space<vmem>>, vector<2x8x32xf32>,
    return
  }
  func.func @transform_0(%arg0: i32, %arg1: i32) -> (i32, i32) {
    %c0_i32 = arith.constant 0 : i32
    %c0_i32_0 = arith.constant 0 : i32
    return %arg1, %c0_i32 : i32, i32
  }
  func.func @transform_1(%arg0: i32, %arg1: i32) -> (i32, i32) {
    %c0_i32 = arith.constant 0 : i32
    %c0_i32_0 = arith.constant 0 : i32
    return %c0_i32, %arg0 : i32, i32
  }
  func.func @transform_2(%arg0: i32, %arg1: i32) -> (i32, i32, i32) {
    %c0_i32 = arith.constant 0 : i32
    %c0_i32_0 = arith.constant 0 : i32
    return %arg1, %c0_i32, %arg0 : i32, i32, i32
  }
}

</mosaic_0001>

<llo_original>
// kernel: tpu_custom_call.1
$region0: #{tpu_custom_call.1}
  #allocation0 [shape = 'u32[]', space=smem, size = 0x4, offset = 0x4, fixed_abs, tag = 'smem constant byte address 0x4 - core index']
  #allocation1 [shape = 'u32[144,128]{1,0:T(1,128)}', space=vmem, size = 0x12000, scoped, tag = 'internal scratch']
  %s0 = inlined_call_operand.hbm [shape: f32[2,8], index: 0, kind: input, shape index: {}]
  %s1 = inlined_call_operand.hbm [shape: f32[8,32], index: 1, kind: input, shape index: {}]
  %s2 = inlined_call_operand.hbm [shape: f32[2,8,32], index: 2, kind: output, shape index: {}]
  %s3 = sld [smem:[#allocation0]]
  $region26: #{tpu_custom_call.1} parent=0
    _
  %s5 = ssub.s32 1, %s3
  %s6 = scalar_select 0, %s5, %s3
  $region1: #{tpu_custom_call.1} parent=0
    #allocation2 [shape = 'u8[1024]{0}', space=vmem, size = 0x400, scoped, tag = 'input window, operand 0, single buffered']
    #allocation3 [shape = 's32[1]{0}', space=sflag, size = 0x4, scoped, tag = 'scoped memory for tpu_custom_call.1']
    #allocation4 [shape = 's32[1]{0}', space=sflag, size = 0x4, scoped, tag = 'scoped memory for tpu_custom_call.1']
    #allocation5 [shape = 'u8[4096]{0}', space=vmem, size = 0x1000, scoped, tag = 'input window, operand 1, single buffered']
    #allocation6 [shape = 's32[1]{0}', space=sflag, size = 0x4, scoped, tag = 'scoped memory for tpu_custom_call.1']
    #allocation7 [shape = 'u8[8192]{0}', space=vmem, size = 0x2000, scoped, tag = 'output window, operand 0, single buffered']
    %7 = vsyncpa [#allocation3], 0
    %8 = vsyncpa [#allocation6], 0
    %9 = vsyncpa [#allocation4], 0
    // Predicated region
    $region2: #{tpu_custom_call.1} parent=1 // pred_check
      _
    $region3: #{tpu_custom_call.1} parent=1 // pred_check_branch
      %11 = sbr.rel (0) target = $region5
    $region4: #{tpu_custom_call.1} parent=1 // pred_region
      %s13 = ssub.s32 32, 32
      %14 = vsyncadd [#allocation3], %s13
      %s16 = sshll.u32 [#allocation2], 4
      %s17 = int_to_ptr.vmem [resolvable:$true] %s16
      %19 = dma.hbm_to_vmem [thread:$0]  %s0, 32, %s17, [#allocation3]
    $region5: #{tpu_custom_call.1} parent=1 // pred_fallthru
      _
    // Predicated region
    $region6: #{tpu_custom_call.1} parent=1 // pred_check
      _
    $region7: #{tpu_custom_call.1} parent=1 // pred_check_branch
      %21 = sbr.rel (0) target = $region9
    $region8: #{tpu_custom_call.1} parent=1 // pred_region
      %s23 = ssub.s32 128, 128
      %24 = vsyncadd [#allocation6], %s23
      %s26 = sshll.u32 [#allocation5], 4
      %s27 = int_to_ptr.vmem [resolvable:$true] %s26
      %29 = dma.hbm_to_vmem [thread:$0]  %s1, 128, %s27, [#allocation6]
    $region9: #{tpu_custom_call.1} parent=1 // pred_fallthru
      _
    // Predicated region
    $region10: #{tpu_custom_call.1} parent=1 // pred_check
      _
    $region11: #{tpu_custom_call.1} parent=1 // pred_check_branch
      %31 = sbr.rel (0) target = $region13
    $region12: #{tpu_custom_call.1} parent=1 // pred_region
      %32 = dma.done [#allocation3], 32
    $region13: #{tpu_custom_call.1} parent=1 // pred_fallthru
      _
    // Predicated region
    $region14: #{tpu_custom_call.1} parent=1 // pred_check
      _
    $region15: #{tpu_custom_call.1} parent=1 // pred_check_branch
      %34 = sbr.rel (0) target = $region17
    $region16: #{tpu_custom_call.1} parent=1 // pred_region
      %35 = dma.done [#allocation6], 128
    $region17: #{tpu_custom_call.1} parent=1 // pred_fallthru
      _
    %v36 = vld [vmem:[#allocation2] sm:$0x3]
    %v37 = vld [vmem:[#allocation5] sm:$0xff]
    %v38 = vlaneseq
    %v39 = vshrl.u32 %v38, 7
    %v40 = vsub.s32 0, %v39
    %v41 = vrot.slane %v36, %v40
    %43 = vbcast.lane.b32.xlu0 %v41, 256
    %v44 = vpop.permute.xlu0 %43
    %v45 = vlaneseq
    %v46 = vshrl.u32 %v45, 7
    %v47 = vsub.s32 1, %v46
    %v48 = vrot.slane %v36, %v47
    %50 = vbcast.lane.b32.xlu0 %v48, 256
    %v51 = vpop.permute.xlu0 %50
    %v52 = vmul.f32 %v44, %v37
    %v53 = vmul.f32 %v51, %v37
    %vm54 = vcmask 261120
    %55 = vst.msk [vmem:[#allocation7] sm:$0xff] %vm54, %v52
    %56 = vst.msk [vmem:[#allocation7 + $0x8] sm:$0xff] %vm54, %v53
    // Predicated region
    $region18: #{tpu_custom_call.1} parent=1 // pred_check
      _
    $region19: #{tpu_custom_call.1} parent=1 // pred_check_branch
      %58 = sbr.rel (0) target = $region21
    $region20: #{tpu_custom_call.1} parent=1 // pred_region
      %s60 = ssub.s32 256, 256
      %61 = vsyncadd [#allocation4], %s60
      %s62 = sshll.u32 [#allocation7], 4
      %s63 = int_to_ptr.vmem [resolvable:$true] %s62
      %68 = dma.vmem_to_hbm [thread:$0]  %s63, 256, %s2, [#allocation4], 128, 128, 8
    $region21: #{tpu_custom_call.1} parent=1 // pred_fallthru
      _
    // Predicated region
    $region22: #{tpu_custom_call.1} parent=1 // pred_check
      _
    $region23: #{tpu_custom_call.1} parent=1 // pred_check_branch
      %70 = sbr.rel (0) target = $region25
    $region24: #{tpu_custom_call.1} parent=1 // pred_region
      %71 = dma.done [#allocation4], 256
    $region25: #{tpu_custom_call.1} parent=1 // pred_fallthru
      _
    %72 = vsyncpa [#allocation3], 1
    %73 = vsyncpa [#allocation6], 1
    %74 = vsyncpa [#allocation4], 1

</llo_original>
